<compile_context>
chip_gen: v5e
topology: v5e:2x2
jax: 0.10.0
libtpu: 0.0.40
codegen_flags: <defaults>
</compile_context>

<pallas_src>
import functools

import jax
import jax.numpy as jnp
from jax.experimental import pallas as pl
from jax.experimental.pallas import tpu as pltpu


def gcn_kernel(L_ref, x_ref, wT_ref, b_ref, md_ref, *, layers):
    """One batch element, full layer stack.

    L_ref  : (N, N)              graph operator, already in MXU dtype (bf16/f32)
    x_ref  : (N, H)              node features (f32)
    wT_ref : (H, H)              W.T, already in MXU dtype
    b_ref  : (1, H)              bias (f32)
    md_ref : (2, (layers+1)*H)   packed taps: row 0 = node-0, row 1 = node-1
    """
    L = L_ref[...]                                   # MXU operand, loaded once
    wT = wT_ref[...]                                 # MXU operand, loaded once
    mxu_dtype = wT.dtype
    bias = b_ref[...].astype(jnp.float32)            # (1, H), broadcasts over rows

    x = x_ref[...].astype(jnp.float32)               # resident f32 activation (N, H)
    taps = [x[0:2, :]]                               # layer-0 taps (the input)

    # Short static layer loop -> unrolled (best for small fixed trip counts).
    for _ in range(layers):
        # (L @ x) @ W.T reassociated to L @ (x @ W.T); both are plain 2-D dots.
        xw = jnp.dot(x.astype(mxu_dtype), wT,
                     preferred_element_type=jnp.float32)           # (N, H)
        y = jnp.dot(L, xw.astype(mxu_dtype),
                    preferred_element_type=jnp.float32)            # (N, H)
        a = jnp.maximum(y + bias, 0.0)               # bias + ReLU in f32 (VPU)
        # dropout: identity (eval mode)
        x = a + x                                    # resnet (f32)
        taps.append(x[0:2, :])

    # Single lane-dense store of all taps: (2, (layers+1)*H).
    md_ref[...] = jnp.concatenate(taps, axis=-1).astype(md_ref.dtype)


def _padded_block_bytes(shape, itemsize):
    """VMEM footprint of a block after (8, 128) tile padding."""
    dims = list(shape)
    if len(dims) == 1:
        dims = [1] + dims
    dims[-1] = -(-dims[-1] // 128) * 128
    dims[-2] = -(-dims[-2] // 8) * 8
    total = itemsize
    for d in dims:
        total *= d
    return total


@functools.partial(jax.jit, static_argnames=("layers", "use_bf16_matmul"))
def gcn_forward(x, L, W, b, layers, use_bf16_matmul=True):
    """Full GCN forward. W has PyTorch nn.Linear layout (outSize, inSize)."""
    B, N, H = x.shape
    assert W.shape == (H, H), "resnet path requires inSize == outSize"
    assert L.shape == (B, N, N)
    assert N >= 2, "forward taps node 0 and node 1"

    mxu_dtype = jnp.bfloat16 if use_bf16_matmul else jnp.float32
    L_in = L.astype(mxu_dtype)                 # bf16 L in HBM: halves dominant DMA
    wT = jnp.transpose(W).astype(mxu_dtype)    # (inSize, outSize): kernel does y @ W.T
    b2 = b.reshape(1, H).astype(jnp.float32)   # bias stays f32 (elementwise path)

    T = (layers + 1) * H                       # packed tap width (128 at H=32, L=3)

    # Derive the VMEM budget from the actual double-buffered block sizes.
    mxu_itemsize = 2 if use_bf16_matmul else 4
    out_itemsize = jnp.dtype(x.dtype).itemsize
    est = (2 * (_padded_block_bytes((N, N), mxu_itemsize)        # L (dbl-buffered)
                + _padded_block_bytes((N, H), out_itemsize)      # x (dbl-buffered)
                + _padded_block_bytes((2, T), out_itemsize))     # out (dbl-buffered)
           + _padded_block_bytes((H, H), mxu_itemsize)           # W.T (resident)
           + _padded_block_bytes((1, H), 4))                     # bias (resident)
    vmem_limit = int(min(100 * 2 ** 20, max(4 * 2 ** 20, 8 * est)))

    md = pl.pallas_call(
        functools.partial(gcn_kernel, layers=layers),
        out_shape=jax.ShapeDtypeStruct((B, 2, T), x.dtype),
        grid=(B,),
        in_specs=[
            pl.BlockSpec((None, N, N), lambda i: (i, 0, 0)),     # L, per-batch
            pl.BlockSpec((None, N, H), lambda i: (i, 0, 0)),     # x, per-batch
            pl.BlockSpec((H, H), lambda i: (0, 0)),              # W.T, shared
            pl.BlockSpec((1, H), lambda i: (0, 0)),              # bias, shared
        ],
        out_specs=pl.BlockSpec((None, 2, T), lambda i: (i, 0, 0)),
        compiler_params=pltpu.CompilerParams(
            dimension_semantics=("parallel",),                   # megacore on v7x
            vmem_limit_bytes=vmem_limit,
        ),
    )(L_in, x, wT, b2)

    md = md.reshape(B, 2, layers + 1, H)
    return md[:, 0], md[:, 1]                                    # m_all, d_all


def gcn_reference(x, L, W, b, layers):
    """Pure-JAX reference matching the PyTorch forward (eval mode)."""
    m_slices = [x[:, 0, :]]
    d_slices = [x[:, 1, :]]
    for _ in range(layers):
        a = jnp.einsum("bnm,bmh->bnh", L, x) @ W.T + b
        a = jnp.maximum(a, 0.0)
        a = a + x                  # resnet
        x = a
        m_slices.append(x[:, 0, :])
        d_slices.append(x[:, 1, :])
    return jnp.stack(m_slices, axis=1), jnp.stack(d_slices, axis=1)


if __name__ == "__main__":
    B, N, H = 2, 8, 32             # batch, nodes, inSize == outSize (resnet + cat)
    LAYERS = 3

    key = jax.random.PRNGKey(0)
    kx, kL, kW, kb = jax.random.split(key, 4)

    x = jax.random.normal(kx, (B, N, H), dtype=jnp.float32)
    L = jax.random.normal(kL, (B, N, N), dtype=jnp.float32) * 0.1
    # deterministic nn.Linear-style init (uniform in +/- 1/sqrt(inSize))
    bound = 1.0 / (H ** 0.5)
    W = jax.random.uniform(kW, (H, H), minval=-bound, maxval=bound, dtype=jnp.float32)
    bvec = jax.random.uniform(kb, (H,), minval=-bound, maxval=bound, dtype=jnp.float32)

    m_ref, d_ref = gcn_reference(x, L, W, bvec, LAYERS)

    # f32 MXU path: tight check.
    m32, d32 = gcn_forward(x, L, W, bvec, LAYERS, use_bf16_matmul=False)
    jax.block_until_ready((m32, d32))
    assert m32.shape == (B, LAYERS + 1, H) and d32.shape == (B, LAYERS + 1, H)
    assert jnp.allclose(m32, m_ref, atol=5e-4, rtol=5e-4)
    assert jnp.allclose(d32, d_ref, atol=5e-4, rtol=5e-4)

    # bf16 operand path (bf16 L/W streamed from HBM, f32 accumulation): loose check.
    mbf, dbf = gcn_forward(x, L, W, bvec, LAYERS, use_bf16_matmul=True)
    jax.block_until_ready((mbf, dbf))
    assert jnp.allclose(mbf, m_ref, atol=5e-2, rtol=5e-2)
    assert jnp.allclose(dbf, d_ref, atol=5e-2, rtol=5e-2)

    print("KERNEL_OK")
</pallas_src>

<mosaic_0001>
module attributes {stable_mosaic.version = 11 : i64} {
  func.func @gcn_kernel(%arg0: i32, %arg1: memref<1x8x8xf32, #tpu.memory_space<vmem>>, %arg2: memref<1x8x32xf32, #tpu.memory_space<vmem>>, %arg3: memref<32x32xf32, #tpu.memory_space<vmem>>, %arg4: memref<1x32xf32, #tpu.memory_space<vmem>>, %arg5: memref<1x2x128xf32, #tpu.memory_space<vmem>>) attributes {dimension_semantics = [#tpu.dimension_semantics<parallel>], iteration_bounds = array<i64: 2>, scalar_prefetch = 0 : i64, scratch_operands = 0 : i64, tpu.core_type = #tpu.core_type<tc>, window_params = [{transform_indices = @transform_0, window_bounds = array<i64: 1, 8, 8>}, {transform_indices = @transform_1, window_bounds = array<i64: 1, 8, 32>}, {pipeline_mode = #tpu.pipeline_mode<synchronous>, transform_indices = @transform_2, window_bounds = array<i64: 32, 32>}, {pipeline_mode = #tpu.pipeline_mode<synchronous>, transform_indices = @transform_3, window_bounds = array<i64: 1, 32>}, {transform_indices = @transform_4, window_bounds = array<i64: 1, 2, 128>}]} {
    %c0 = arith.constant 0 : index
    %c0_0 = arith.constant 0 : index
    %c0_1 = arith.constant 0 : index
    %0 = vector.load %arg1[%c0, %c0_0, %c0_1] : memref<1x8x8xf32, #tpu.memory_space<vmem>>, vector<1x8x8xf32>
    %1 = vector.shape_cast %0 : vector<1x8x8xf32> to vector<8x8xf32>
    %c0_2 = arith.constant 0 : index
    %c0_3 = arith.constant 0 : index
    %2 = vector.load %arg3[%c0_2, %c0_3] : memref<32x32xf32, #tpu.memory_space<vmem>>, vector<32x32xf32>
    %c0_4 = arith.constant 0 : index
    %c0_5 = arith.constant 0 : index
    %3 = vector.load %arg4[%c0_4, %c0_5] : memref<1x32xf32, #tpu.memory_space<vmem>>, vector<1x32xf32>
    %c0_6 = arith.constant 0 : index
    %c0_7 = arith.constant 0 : index
    %c0_8 = arith.constant 0 : index
    %4 = vector.load %arg2[%c0_6, %c0_7, %c0_8] : memref<1x8x32xf32, #tpu.memory_space<vmem>>, vector<1x8x32xf32>
    %5 = vector.shape_cast %4 : vector<1x8x32xf32> to vector<8x32xf32>
    %6 = vector.extract_strided_slice %5 {offsets = [0, 0], sizes = [2, 32], strides = [1, 1]} : vector<8x32xf32> to vector<2x32xf32>
    %cst = arith.constant dense<0.000000e+00> : vector<8x32xf32>
    %7 = tpu.matmul %5, %2, %cst {dimension_numbers = #tpu.dot_dimension_numbers<[1], [0], [0], [1], [0, 0, 1, 1], [], []>} : vector<8x32xf32>, vector<32x32xf32>, vector<8x32xf32> -> vector<8x32xf32>
    %cst_9 = arith.constant dense<0.000000e+00> : vector<8x32xf32>
    %8 = tpu.matmul %1, %7, %cst_9 {dimension_numbers = #tpu.dot_dimension_numbers<[1], [0], [0], [1], [0, 0, 1, 1], [], []>} : vector<8x8xf32>, vector<8x32xf32>, vector<8x32xf32> -> vector<8x32xf32>
    %9 = vector.broadcast %3 : vector<1x32xf32> to vector<8x32xf32>
    %10 = arith.addf %8, %9 : vector<8x32xf32>
    %cst_10 = arith.constant 0.000000e+00 : f32
    %11 = vector.broadcast %cst_10 : f32 to vector<8x32xf32>
    %12 = arith.maximumf %10, %11 : vector<8x32xf32>
    %13 = arith.addf %12, %5 : vector<8x32xf32>
    %14 = vector.extract_strided_slice %13 {offsets = [0, 0], sizes = [2, 32], strides = [1, 1]} : vector<8x32xf32> to vector<2x32xf32>
    %cst_11 = arith.constant dense<0.000000e+00> : vector<8x32xf32>
    %15 = tpu.matmul %13, %2, %cst_11 {dimension_numbers = #tpu.dot_dimension_numbers<[1], [0], [0], [1], [0, 0, 1, 1], [], []>} : vector<8x32xf32>, vector<32x32xf32>, vector<8x32xf32> -> vector<8x32xf32>
    %cst_12 = arith.constant dense<0.000000e+00> : vector<8x32xf32>
    %16 = tpu.matmul %1, %15, %cst_12 {dimension_numbers = #tpu.dot_dimension_numbers<[1], [0], [0], [1], [0, 0, 1, 1], [], []>} : vector<8x8xf32>, vector<8x32xf32>, vector<8x32xf32> -> vector<8x32xf32>
    %17 = vector.broadcast %3 : vector<1x32xf32> to vector<8x32xf32>
    %18 = arith.addf %16, %17 : vector<8x32xf32>
    %cst_13 = arith.constant 0.000000e+00 : f32
    %19 = vector.broadcast %cst_13 : f32 to vector<8x32xf32>
    %20 = arith.maximumf %18, %19 : vector<8x32xf32>
    %21 = arith.addf %20, %13 : vector<8x32xf32>
    %22 = vector.extract_strided_slice %21 {offsets = [0, 0], sizes = [2, 32], strides = [1, 1]} : vector<8x32xf32> to vector<2x32xf32>
    %cst_14 = arith.constant dense<0.000000e+00> : vector<8x32xf32>
    %23 = tpu.matmul %21, %2, %cst_14 {dimension_numbers = #tpu.dot_dimension_numbers<[1], [0], [0], [1], [0, 0, 1, 1], [], []>} : vector<8x32xf32>, vector<32x32xf32>, vector<8x32xf32> -> vector<8x32xf32>
    %cst_15 = arith.constant dense<0.000000e+00> : vector<8x32xf32>
    %24 = tpu.matmul %1, %23, %cst_15 {dimension_numbers = #tpu.dot_dimension_numbers<[1], [0], [0], [1], [0, 0, 1, 1], [], []>} : vector<8x8xf32>, vector<8x32xf32>, vector<8x32xf32> -> vector<8x32xf32>
    %25 = vector.broadcast %3 : vector<1x32xf32> to vector<8x32xf32>
    %26 = arith.addf %24, %25 : vector<8x32xf32>
    %cst_16 = arith.constant 0.000000e+00 : f32
    %27 = vector.broadcast %cst_16 : f32 to vector<8x32xf32>
    %28 = arith.maximumf %26, %27 : vector<8x32xf32>
    %29 = arith.addf %28, %21 : vector<8x32xf32>
    %30 = vector.extract_strided_slice %29 {offsets = [0, 0], sizes = [2, 32], strides = [1, 1]} : vector<8x32xf32> to vector<2x32xf32>
    %31 = tpu.concatenate %6, %14, %22, %30 in 1 : vector<2x32xf32>, vector<2x32xf32>, vector<2x32xf32>, vector<2x32xf32> -> vector<2x128xf32>
    %c0_17 = arith.constant 0 : index
    %c0_18 = arith.constant 0 : index
    %c0_19 = arith.constant 0 : index
    %32 = vector.load %arg5[%c0_17, %c0_18, %c0_19] : memref<1x2x128xf32, #tpu.memory_space<vmem>>, vector<1x2x128xf32>
    %33 = vector.shape_cast %32 : vector<1x2x128xf32> to vector<2x128xf32>
    %34 = vector.shape_cast %31 : vector<2x128xf32> to vector<1x2x128xf32>
    tpu.vector_store %arg5[%c0_17, %c0_18, %c0_19], %34 {strides = array<i32>} : memref<1x2x128xf32, #tpu.memory_space<vmem>>, vector<1x2x128xf32>,
    return
  }
  func.func @transform_0(%arg0: i32) -> (i32, i32, i32) {
    %c0_i32 = arith.constant 0 : i32
    %c0_i32_0 = arith.constant 0 : i32
    %c0_i32_1 = arith.constant 0 : i32
    return %arg0, %c0_i32, %c0_i32_0 : i32, i32, i32
  }
  func.func @transform_1(%arg0: i32) -> (i32, i32, i32) {
    %c0_i32 = arith.constant 0 : i32
    %c0_i32_0 = arith.constant 0 : i32
    %c0_i32_1 = arith.constant 0 : i32
    return %arg0, %c0_i32, %c0_i32_0 : i32, i32, i32
  }
  func.func @transform_2(%arg0: i32) -> (i32, i32) {
    %c0_i32 = arith.constant 0 : i32
    %c0_i32_0 = arith.constant 0 : i32
    %c0_i32_1 = arith.constant 0 : i32
    return %c0_i32, %c0_i32_0 : i32, i32
  }
  func.func @transform_3(%arg0: i32) -> (i32, i32) {
    %c0_i32 = arith.constant 0 : i32
    %c0_i32_0 = arith.constant 0 : i32
    %c0_i32_1 = arith.constant 0 : i32
    return %c0_i32, %c0_i32_0 : i32, i32
  }
  func.func @transform_4(%arg0: i32) -> (i32, i32, i32) {
    %c0_i32 = arith.constant 0 : i32
    %c0_i32_0 = arith.constant 0 : i32
    %c0_i32_1 = arith.constant 0 : i32
    return %arg0, %c0_i32, %c0_i32_0 : i32, i32, i32
  }
}

</mosaic_0001>

<llo_original>
// kernel: gcn_forward.1
$region0: #{gcn_forward.1}
  #allocation0 [shape = 'u32[]', space=smem, size = 0x4, offset = 0x4, fixed_abs, tag = 'smem constant byte address 0x4 - core index']
  #allocation1 [shape = 'u32[72,128]{1,0:T(1,128)}', space=vmem, size = 0x9000, scoped, tag = 'internal scratch']
  %s0 = inlined_call_operand.vmem [shape: f32[2,8,8], index: 0, kind: input, shape index: {}]
  %s1 = inlined_call_operand.vmem [shape: f32[2,8,32], index: 1, kind: input, shape index: {}]
  %s2 = inlined_call_operand.vmem [shape: f32[32,32], index: 2, kind: input, shape index: {}]
  %s3 = inlined_call_operand.vmem [shape: f32[1,32], index: 3, kind: input, shape index: {}]
  %s4 = inlined_call_operand.vmem [shape: f32[2,2,128], index: 4, kind: output, shape index: {}]
  %s5 = sld [smem:[#allocation0]]
  $region49: #{gcn_forward.1} parent=0
    _
  %s7 = ssub.s32 1, %s5
  %s8 = scalar_select 0, %s7, %s5
  loop: start=0, step=1, limit=4
  $region2: #{gcn_forward.1} parent=0 // loop_pre_header
    _
  $region3: #{gcn_forward.1} parent=0 // loop_header
    %s10 = sphi 0, %s14
    %p11 = scmp.ge.s32.totalorder %s10, 4
    %s20 = sphi 0, %s22
    %s23 = sphi 0, %s20
    %s24 = sphi 0, %s23
    %s40 = sphi 0, %s24
    %s46 = sphi 0, %s48
    %s49 = sphi 0, %s46
    %s50 = sphi 0, %s49
    %s66 = sphi 0, %s50
    %s70 = sphi 0, %s70
    %s72 = sphi 0, %s70
    %s73 = sphi 0, %s72
    %s87 = sphi 0, %s73
    %s91 = sphi 0, %s91
    %s93 = sphi 0, %s91
    %s94 = sphi 0, %s93
    %s108 = sphi 0, %s94
    %s114 = sphi 0, %s116
    %s117 = sphi 0, %s114
    %s118 = sphi 0, %s117
    %s134 = sphi 0, %s118
  $region4: #{gcn_forward.1} parent=0 // loop_header_branch
    %13 = sbr.rel (%p11) target = $region8
  $region5: #{gcn_forward.1} parent=0 // loop_body
    %s15 = ssub.s32 %s10, 1
    %s16 = ssub.s32 %s10, 2
    %s17 = sadd.s32 %s10, 1
    %s18 = ssub.s32 %s10, %s17
    %p19 = scmp.eq.s32.totalorder %s18, 0
    %s21 = sadd.s32 %s20, 1
    %s22 = scalar_select %p19, %s20, %s21
    %p25 = pneg %p19
    %p26 = scmp.eq.s32.totalorder %s10, 1
    %p27 = por %p25, %p26
    %p28 = scmp.ne.s32.totalorder %s20, %s23
    %p29 = scmp.eq.s32.totalorder %s10, 0
    %p30 = por %p28, %p29
    %p31 = scmp.ne.s32.totalorder %s20, %s23
    %p32 = scmp.eq.s32.totalorder %s15, 1
    %p33 = por %p31, %p32
    %p34 = scmp.ne.s32.totalorder %s23, %s24
    %p35 = scmp.eq.s32.totalorder %s15, 0
    %p36 = por %p34, %p35
    %p37 = scmp.ne.s32.totalorder %s23, %s24
    %p38 = scmp.eq.s32.totalorder %s16, 1
    %p39 = por %p37, %p38
    %p41 = scmp.ne.s32.totalorder %s24, %s40
    %p42 = scmp.eq.s32.totalorder %s16, 0
    %p43 = por %p41, %p42
    %s44 = ssub.s32 %s10, %s17
    %p45 = scmp.eq.s32.totalorder %s44, 0
    %s47 = sadd.s32 %s46, 1
    %s48 = scalar_select %p45, %s46, %s47
    %p51 = pneg %p45
    %p52 = scmp.eq.s32.totalorder %s10, 1
    %p53 = por %p51, %p52
    %p54 = scmp.ne.s32.totalorder %s46, %s49
    %p55 = scmp.eq.s32.totalorder %s10, 0
    %p56 = por %p54, %p55
    %p57 = scmp.ne.s32.totalorder %s46, %s49
    %p58 = scmp.eq.s32.totalorder %s15, 1
    %p59 = por %p57, %p58
    %p60 = scmp.ne.s32.totalorder %s49, %s50
    %p61 = scmp.eq.s32.totalorder %s15, 0
    %p62 = por %p60, %p61
    %p63 = scmp.ne.s32.totalorder %s49, %s50
    %p64 = scmp.eq.s32.totalorder %s16, 1
    %p65 = por %p63, %p64
    %p67 = scmp.ne.s32.totalorder %s50, %s66
    %p68 = scmp.eq.s32.totalorder %s16, 0
    %p69 = por %p67, %p68
    %s71 = sadd.s32 %s70, 1
    %p74 = scmp.eq.s32.totalorder %s10, 1
    %p75 = scmp.ne.s32.totalorder %s70, %s72
    %p76 = scmp.eq.s32.totalorder %s10, 0
    %p77 = por %p75, %p76
    %p78 = scmp.ne.s32.totalorder %s70, %s72
    %p79 = scmp.eq.s32.totalorder %s15, 1
    %p80 = por %p78, %p79
    %p81 = scmp.ne.s32.totalorder %s72, %s73
    %p82 = scmp.eq.s32.totalorder %s15, 0
    %p83 = por %p81, %p82
    %p84 = scmp.ne.s32.totalorder %s72, %s73
    %p85 = scmp.eq.s32.totalorder %s16, 1
    %p86 = por %p84, %p85
    %p88 = scmp.ne.s32.totalorder %s73, %s87
    %p89 = scmp.eq.s32.totalorder %s16, 0
    %p90 = por %p88, %p89
    %s92 = sadd.s32 %s91, 1
    %p95 = scmp.eq.s32.totalorder %s10, 1
    %p96 = scmp.ne.s32.totalorder %s91, %s93
    %p97 = scmp.eq.s32.totalorder %s10, 0
    %p98 = por %p96, %p97
    %p99 = scmp.ne.s32.totalorder %s91, %s93
    %p100 = scmp.eq.s32.totalorder %s15, 1
    %p101 = por %p99, %p100
    %p102 = scmp.ne.s32.totalorder %s93, %s94
    %p103 = scmp.eq.s32.totalorder %s15, 0
    %p104 = por %p102, %p103
    %p105 = scmp.ne.s32.totalorder %s93, %s94
    %p106 = scmp.eq.s32.totalorder %s16, 1
    %p107 = por %p105, %p106
    %p109 = scmp.ne.s32.totalorder %s94, %s108
    %p110 = scmp.eq.s32.totalorder %s16, 0
    %p111 = por %p109, %p110
    %s112 = ssub.s32 %s10, %s17
    %p113 = scmp.eq.s32.totalorder %s112, 0
    %s115 = sadd.s32 %s114, 1
    %s116 = scalar_select %p113, %s114, %s115
    %p119 = pneg %p113
    %p120 = scmp.eq.s32.totalorder %s10, 1
    %p121 = por %p119, %p120
    %p122 = scmp.ne.s32.totalorder %s114, %s117
    %p123 = scmp.eq.s32.totalorder %s10, 0
    %p124 = por %p122, %p123
    %p125 = scmp.ne.s32.totalorder %s114, %s117
    %p126 = scmp.eq.s32.totalorder %s15, 1
    %p127 = por %p125, %p126
    %p128 = scmp.ne.s32.totalorder %s117, %s118
    %p129 = scmp.eq.s32.totalorder %s15, 0
    %p130 = por %p128, %p129
    %p131 = scmp.ne.s32.totalorder %s117, %s118
    %p132 = scmp.eq.s32.totalorder %s16, 1
    %p133 = por %p131, %p132
    %p135 = scmp.ne.s32.totalorder %s118, %s134
    %p136 = scmp.eq.s32.totalorder %s16, 0
    %p137 = por %p135, %p136
    %p138 = scmp.le.s32.totalorder 1, %s10
    %p139 = scmp.lt.s32.totalorder %s10, 3
    %p140 = pnand %p138, %p139
    %p141 = pneg %p140
    // Predicated region
    $region9: #{gcn_forward.1} parent=5 // pred_check
      _
    $region10: #{gcn_forward.1} parent=5 // pred_check_branch
      %143 = sbr.rel (%p140) target = $region12
    $region11: #{gcn_forward.1} parent=5 // pred_region
      %s144 = ssub.s32 %s10, 1
      // Predicated region
      $region13: #{gcn_forward.1} parent=11 // pred_check
        %p145 = pneg %p83
      $region14: #{gcn_forward.1} parent=11 // pred_check_branch
        %147 = sbr.rel (%p145) target = $region16
      $region15: #{gcn_forward.1} parent=11 // pred_region
        _
      $region16: #{gcn_forward.1} parent=11 // pred_fallthru
        _
      // Predicated region
      $region17: #{gcn_forward.1} parent=11 // pred_check
        %p148 = pneg %p104
      $region18: #{gcn_forward.1} parent=11 // pred_check_branch
        %150 = sbr.rel (%p148) target = $region20
      $region19: #{gcn_forward.1} parent=11 // pred_region
        _
      $region20: #{gcn_forward.1} parent=11 // pred_fallthru
        _
    $region12: #{gcn_forward.1} parent=5 // pred_fallthru
      _
    %p151 = scmp.lt.s32.totalorder %s10, 2
    // Predicated region
    $region21: #{gcn_forward.1} parent=5 // pred_check
      %p152 = pneg %p151
    $region22: #{gcn_forward.1} parent=5 // pred_check_branch
      %154 = sbr.rel (%p152) target = $region24
    $region23: #{gcn_forward.1} parent=5 // pred_region
      // Predicated region
      $region25: #{gcn_forward.1} parent=23 // pred_check
        %p155 = pneg %p30
      $region26: #{gcn_forward.1} parent=23 // pred_check_branch
        %157 = sbr.rel (%p155) target = $region28
      $region27: #{gcn_forward.1} parent=23 // pred_region
        %p158 = scmp.lt.s32.totalorder %s10, 1
        %s159 = scalar_select %p158, %s10, 1
        %s160 = smul.addr %s159, 8
        %s161 = scalar_lea.vmem %s0, %s160
      $region28: #{gcn_forward.1} parent=23 // pred_fallthru
        _
      // Predicated region
      $region29: #{gcn_forward.1} parent=23 // pred_check
        %p162 = pneg %p56
      $region30: #{gcn_forward.1} parent=23 // pred_check_branch
        %164 = sbr.rel (%p162) target = $region32
      $region31: #{gcn_forward.1} parent=23 // pred_region
        %p165 = scmp.lt.s32.totalorder %s10, 1
        %s166 = scalar_select %p165, %s10, 1
        %s167 = smul.addr %s166, 8
        %s168 = scalar_lea.vmem %s1, %s167
      $region32: #{gcn_forward.1} parent=23 // pred_fallthru
        _
    $region24: #{gcn_forward.1} parent=5 // pred_fallthru
      _
    %p169 = scmp.le.s32.totalorder 1, %s10
    %p170 = scmp.lt.s32.totalorder %s10, 3
    %p171 = pnand %p169, %p170
    %p172 = pneg %p171
    // Predicated region
    $region33: #{gcn_forward.1} parent=5 // pred_check
      _
    $region34: #{gcn_forward.1} parent=5 // pred_check_branch
      %174 = sbr.rel (%p171) target = $region36
    $region35: #{gcn_forward.1} parent=5 // pred_region
      %s175 = ssub.s32 %s10, 1
      %p176 = scmp.lt.s32.totalorder %s15, 1
      %s177 = scalar_select %p176, %s15, 1
      %s178 = smul.addr %s177, 8
      %s179 = scalar_lea.vmem %s0, %s178
      %p180 = pneg %p36
      %p181 = pneg %p33
      %p182 = scmp.lt.s32.totalorder %s15, 1
      %s183 = scalar_select %p182, %s15, 1
      %s184 = smul.addr %s183, 8
      %s185 = scalar_lea.vmem %s1, %s184
      %p186 = pneg %p62
      %p187 = pneg %p59
      %p188 = pneg %p83
      %p189 = pneg %p80
      %p190 = pneg %p104
      %p191 = pneg %p101
      %p192 = pneg %p130
      %p193 = pneg %p127
      %p194 = scmp.lt.s32.totalorder %s15, 1
      %s195 = scalar_select %p194, %s15, 1
      %s196 = smul.addr %s195, 2
      %s197 = scalar_lea.vmem %s4, %s196
      %p198 = scmp.lt.s32.totalorder %s15, 1
      %s199 = scalar_select %p198, %s15, 1
      %s200 = smul.addr %s199, 8
      %s201 = scalar_lea.vmem %s0, %s200
      %p202 = scmp.lt.s32.totalorder %s15, 1
      %s203 = scalar_select %p202, %s15, 1
      %s204 = smul.addr %s203, 8
      %s205 = scalar_lea.vmem %s1, %s204
      %p206 = scmp.lt.s32.totalorder %s15, 1
      %s207 = scalar_select %p206, %s15, 1
      %s208 = smul.addr %s207, 2
      %s209 = scalar_lea.vmem %s4, %s208
      %v210 = vld [vmem:[%s201] sm:$0xff]
      %v211 = vld [vmem:[%s2] sm:$0xff]
      %v212 = vld [vmem:[%s2 + $0x8] sm:$0xff]
      %v213 = vld [vmem:[%s2 + $0x10] sm:$0xff]
      %v214 = vld [vmem:[%s2 + $0x18] sm:$0xff]
      %v215 = vld [vmem:[%s3] sm:$0x1]
      %v216 = vld [vmem:[%s205] sm:$0xff]
      %vm217 = vcmask 261120
      %v219 = vsel %vm217, %v216, 0
      %221 = vmatpush.msra.mxu0 0.0
      %222 = vmatpush.msra.mxu0 0.0
      %223 = vmatpush.msra.mxu0 0.0
      %224 = vmatpush.msra.mxu0 0.0
      %225 = vmatpush.msra.mxu0 0.0
      %226 = vmatpush.msra.mxu0 0.0
      %227 = vmatpush.msra.mxu0 0.0
      %228 = vmatpush.msra.mxu0 0.0
      %229 = vmatpush.msra.mxu0 0.0
      %230 = vmatpush.msra.mxu0 0.0
      %231 = vmatpush.msra.mxu0 0.0
      %232 = vmatpush.msra.mxu0 0.0
      %233 = vmatpush.msra.mxu0 %v214
      %234 = vmatpush.msra.mxu0 %v213
      %235 = vmatpush.msra.mxu0 %v212
      %236 = vmatpush.msra.mxu0 %v211
      %237 = vmatmul.f32.gmra.mxu0 %v219
      %v238 = vpop.f32.mrf.mxu0
      %v239 = vadd.f32 0.0, %v238
      %240 = vdwg.mxu0
      %v242 = vperm.slane %v215, 0
      %vm244 = vcmask 64512
      %v246 = vsel %vm244, %v210, 0
      %248 = vmatpush.msra.mxu0 0.0
      %249 = vmatpush.msra.mxu0 0.0
      %250 = vmatpush.msra.mxu0 0.0
      %251 = vmatpush.msra.mxu0 0.0
      %252 = vmatpush.msra.mxu0 0.0
      %253 = vmatpush.msra.mxu0 0.0
      %254 = vmatpush.msra.mxu0 0.0
      %255 = vmatpush.msra.mxu0 0.0
      %256 = vmatpush.msra.mxu0 0.0
      %257 = vmatpush.msra.mxu0 0.0
      %258 = vmatpush.msra.mxu0 0.0
      %259 = vmatpush.msra.mxu0 0.0
      %260 = vmatpush.msra.mxu0 0.0
      %261 = vmatpush.msra.mxu0 0.0
      %262 = vmatpush.msra.mxu0 0.0
      %263 = vmatpush.msra.mxu0 %v239
      %264 = vmatmul.f32.gmra.mxu0 %v246
      %v265 = vpop.f32.mrf.mxu0
      %v266 = vadd.f32 %v242, %v265
      %267 = vdwg.mxu0
      %v268 = vmax.f32 %v266, 0.0
      %v269 = vadd.f32 %v268, %v216
      %v271 = vsel %vm217, %v269, 0
      %273 = vmatpush.msra.mxu0 0.0
      %274 = vmatpush.msra.mxu0 0.0
      %275 = vmatpush.msra.mxu0 0.0
      %276 = vmatpush.msra.mxu0 0.0
      %277 = vmatpush.msra.mxu0 0.0
      %278 = vmatpush.msra.mxu0 0.0
      %279 = vmatpush.msra.mxu0 0.0
      %280 = vmatpush.msra.mxu0 0.0
      %281 = vmatpush.msra.mxu0 0.0
      %282 = vmatpush.msra.mxu0 0.0
      %283 = vmatpush.msra.mxu0 0.0
      %284 = vmatpush.msra.mxu0 0.0
      %285 = vmatpush.msra.mxu0 %v214
      %286 = vmatpush.msra.mxu0 %v213
      %287 = vmatpush.msra.mxu0 %v212
      %288 = vmatpush.msra.mxu0 %v211
      %289 = vmatmul.f32.gmra.mxu0 %v271
      %v290 = vpop.f32.mrf.mxu0
      %v291 = vadd.f32 0.0, %v290
      %292 = vdwg.mxu0
      %293 = vmatpush.msra.mxu0 0.0
      %294 = vmatpush.msra.mxu0 0.0
      %295 = vmatpush.msra.mxu0 0.0
      %296 = vmatpush.msra.mxu0 0.0
      %297 = vmatpush.msra.mxu0 0.0
      %298 = vmatpush.msra.mxu0 0.0
      %299 = vmatpush.msra.mxu0 0.0
      %300 = vmatpush.msra.mxu0 0.0
      %301 = vmatpush.msra.mxu0 0.0
      %302 = vmatpush.msra.mxu0 0.0
      %303 = vmatpush.msra.mxu0 0.0
      %304 = vmatpush.msra.mxu0 0.0
      %305 = vmatpush.msra.mxu0 0.0
      %306 = vmatpush.msra.mxu0 0.0
      %307 = vmatpush.msra.mxu0 0.0
      %308 = vmatpush.msra.mxu0 %v291
      %309 = vmatmul.f32.gmra.mxu0 %v246
      %v310 = vpop.f32.mrf.mxu0
      %v311 = vadd.f32 %v242, %v310
      %312 = vdwg.mxu0
      %v313 = vmax.f32 %v311, 0.0
      %v314 = vadd.f32 %v313, %v269
      %v316 = vsel %vm217, %v314, 0
      %318 = vmatpush.msra.mxu0 0.0
      %319 = vmatpush.msra.mxu0 0.0
      %320 = vmatpush.msra.mxu0 0.0
      %321 = vmatpush.msra.mxu0 0.0
      %322 = vmatpush.msra.mxu0 0.0
      %323 = vmatpush.msra.mxu0 0.0
      %324 = vmatpush.msra.mxu0 0.0
      %325 = vmatpush.msra.mxu0 0.0
      %326 = vmatpush.msra.mxu0 0.0
      %327 = vmatpush.msra.mxu0 0.0
      %328 = vmatpush.msra.mxu0 0.0
      %329 = vmatpush.msra.mxu0 0.0
      %330 = vmatpush.msra.mxu0 %v214
      %331 = vmatpush.msra.mxu0 %v213
      %332 = vmatpush.msra.mxu0 %v212
      %333 = vmatpush.msra.mxu0 %v211
      %334 = vmatmul.f32.gmra.mxu0 %v316
      %v335 = vpop.f32.mrf.mxu0
      %v336 = vadd.f32 0.0, %v335
      %337 = vdwg.mxu0
      %338 = vmatpush.msra.mxu0 0.0
      %339 = vmatpush.msra.mxu0 0.0
      %340 = vmatpush.msra.mxu0 0.0
      %341 = vmatpush.msra.mxu0 0.0
      %342 = vmatpush.msra.mxu0 0.0
      %343 = vmatpush.msra.mxu0 0.0
      %344 = vmatpush.msra.mxu0 0.0
      %345 = vmatpush.msra.mxu0 0.0
      %346 = vmatpush.msra.mxu0 0.0
      %347 = vmatpush.msra.mxu0 0.0
      %348 = vmatpush.msra.mxu0 0.0
      %349 = vmatpush.msra.mxu0 0.0
      %350 = vmatpush.msra.mxu0 0.0
      %351 = vmatpush.msra.mxu0 0.0
      %352 = vmatpush.msra.mxu0 0.0
      %353 = vmatpush.msra.mxu0 %v336
      %354 = vmatmul.f32.gmra.mxu0 %v246
      %v355 = vpop.f32.mrf.mxu0
      %v356 = vadd.f32 %v242, %v355
      %357 = vdwg.mxu0
      %v358 = vmax.f32 %v356, 0.0
      %v359 = vadd.f32 %v358, %v314
      %360 = vrot.lane.b32.xlu0 %v269, 32
      %v361 = vpop.permute.xlu0 %360
      %363 = vrot.lane.b32.xlu0 %v314, 64
      %v364 = vpop.permute.xlu0 %363
      %367 = vrot.lane.b32.xlu0 %v359, 96
      %v368 = vpop.permute.xlu0 %367
      %v370 = vsel %vm217, %v216, %v361
      %vm371 = vcmask 523264
      %v372 = vsel %vm371, %v370, %v364
      %vm373 = vcmask 785408
      %v374 = vsel %vm373, %v372, %v368
      %375 = vst [vmem:[%s209] sm:$0x3] %v374
      %p376 = scmp.lt.s32.totalorder %s15, 1
      %s377 = scalar_select %p376, %s15, 1
      %s378 = smul.addr %s377, 2
      %s379 = scalar_lea.vmem %s4, %s378
      // Predicated region
      $region37: #{gcn_forward.1} parent=35 // pred_check
        %p380 = pneg %p127
      $region38: #{gcn_forward.1} parent=35 // pred_check_branch
        %382 = sbr.rel (%p380) target = $region40
      $region39: #{gcn_forward.1} parent=35 // pred_region
        _
      $region40: #{gcn_forward.1} parent=35 // pred_fallthru
        _
    $region36: #{gcn_forward.1} parent=5 // pred_fallthru
      _
    %p383 = scmp.le.s32.totalorder 2, %s10
    // Predicated region
    $region41: #{gcn_forward.1} parent=5 // pred_check
      %p384 = pneg %p383
    $region42: #{gcn_forward.1} parent=5 // pred_check_branch
      %386 = sbr.rel (%p384) target = $region44
    $region43: #{gcn_forward.1} parent=5 // pred_region
      %s387 = ssub.s32 %s10, 2
      // Predicated region
      $region45: #{gcn_forward.1} parent=43 // pred_check
        %p388 = pneg %p133
      $region46: #{gcn_forward.1} parent=43 // pred_check_branch
        %390 = sbr.rel (%p388) target = $region48
      $region47: #{gcn_forward.1} parent=43 // pred_region
        %p391 = scmp.lt.s32.totalorder %s16, 1
        %s392 = scalar_select %p391, %s16, 1
        %s393 = smul.addr %s392, 2
        %s394 = scalar_lea.vmem %s4, %s393
      $region48: #{gcn_forward.1} parent=43 // pred_fallthru
        _
    $region44: #{gcn_forward.1} parent=5 // pred_fallthru
      _
  $region6: #{gcn_forward.1} parent=0 // loop_footer
    %s14 = sadd.s32 1, %s10
  $region7: #{gcn_forward.1} parent=0 // loop_footer_branch
    %9 = sbr.rel target = $region3
  $region8: #{gcn_forward.1} parent=0 // loop_exit
    _

</llo_original>
